<compile_context>
chip_gen: v7x
topology: tpu7x:2x2x1
jax: 0.10.0
libtpu: 0.0.40
codegen_flags: <defaults>
</compile_context>

<pallas_src>
import math
import functools

import jax
import jax.numpy as jnp
from jax.experimental import pallas as pl
from jax.experimental.pallas import tpu as pltpu


# ----------------------------------------------------------------------------
# Positional table construction (the buffer built in PyTorch __init__).
# ----------------------------------------------------------------------------
def make_pos_embedding(emb_size: int, maxlen: int = 5000) -> jnp.ndarray:
    den = jnp.exp(-jnp.arange(0, emb_size, 2, dtype=jnp.float32)
                  * (math.log(10000.0) / emb_size))
    pos = jnp.arange(0, maxlen, dtype=jnp.float32).reshape(maxlen, 1)
    pe = jnp.zeros((maxlen, emb_size), dtype=jnp.float32)
    pe = pe.at[:, 0::2].set(jnp.sin(pos * den))
    pe = pe.at[:, 1::2].set(jnp.cos(pos * den))
    return pe[:, None, :]  # (maxlen, 1, emb_size)


# ----------------------------------------------------------------------------
# Small helpers
# ----------------------------------------------------------------------------
def _i32(v: int):
    """Python int (possibly >= 2**31) -> int32 two's-complement constant."""
    v &= 0xFFFFFFFF
    if v >= 0x80000000:
        v -= 1 << 32
    return jnp.int32(v)


def _lsr(v, k: int):
    """Logical right shift of an int32 array (arithmetic shift + mask)."""
    return (v >> k) & ((1 << (32 - k)) - 1)


def _pos_rows(pos_ref, tile_s: int, resident: bool):
    """(tile_s, 1, E) slab of positional rows for the current seq block."""
    if resident:
        start = pl.multiple_of(pl.program_id(0) * tile_s, tile_s)
        return pos_ref[pl.ds(start, tile_s), :, :]
    return pos_ref[...]


# ----------------------------------------------------------------------------
# Kernels
# ----------------------------------------------------------------------------
def pe_add_kernel(x_ref, pos_ref, o_ref, *, tile_s, resident):
    # (tile_s, B, E) + (tile_s, 1, E): the batch broadcast happens on-chip.
    o_ref[...] = (x_ref[...] + _pos_rows(pos_ref, tile_s, resident)).astype(o_ref.dtype)


def pe_add_dropout_kernel(seed_ref, x_ref, pos_ref, o_ref, *,
                          tile_s, resident, threshold31, inv_keep, B, E):
    y = x_ref[...] + _pos_rows(pos_ref, tile_s, resident)

    # Counter-based RNG: murmur3 fmix32 of (global element index, seed).
    # Grid-invariant (same stream regardless of tiling), pure int32 VPU work,
    # hidden under the HBM traffic of this memory-bound op.
    shape = y.shape
    row = jax.lax.broadcasted_iota(jnp.int32, shape, 0) + pl.program_id(0) * tile_s
    bi = jax.lax.broadcasted_iota(jnp.int32, shape, 1)
    ei = jax.lax.broadcasted_iota(jnp.int32, shape, 2)
    idx = row * (B * E) + bi * E + ei        # wraps mod 2^32 for huge tensors: fine for a hash
    h = idx ^ (seed_ref[0] * _i32(0x9E3779B9))
    h = h ^ _lsr(h, 16)
    h = h * _i32(0x85EBCA6B)
    h = h ^ _lsr(h, 13)
    h = h * _i32(0xC2B2AE35)
    h = h ^ _lsr(h, 16)
    r31 = h & 0x7FFFFFFF                     # uniform in [0, 2^31)

    # Inverted dropout: keep iff r31 < keep_prob * 2^31, scale kept by 1/keep_prob.
    o_ref[...] = jnp.where(r31 < threshold31, y * inv_keep, 0.0).astype(o_ref.dtype)


# ----------------------------------------------------------------------------
# Wrapper
# ----------------------------------------------------------------------------
def _choose_tile_s(S, slab_bytes, target_bytes=8 << 20, min_steps=2):
    """Seq-tile rows so one (tile_s, B, E) block is ~target_bytes.

    tile_s is a *leading* block dim (the trailing block dims equal the full
    (B, E)), so the (8,128)/dtype sublane rounding rules do not constrain it;
    we only cap it for VMEM and clamp it so the grid has >= min_steps steps
    (so the "parallel" seq axis can shard over v7x's 2 TensorCores).
    """
    tile = max(1, int(target_bytes) // max(int(slab_bytes), 1))
    tile = min(tile, S)
    if S >= min_steps:
        tile = min(tile, -(-S // min_steps))
    return max(1, tile)


def _make_specs(tile_s, B, E, s_pad, resident, with_seed):
    if with_seed:   # scalar-prefetch ref is passed positionally to every index_map
        data_map = lambda i, s: (i, 0, 0)
        pos_map = (lambda i, s: (0, 0, 0)) if resident else (lambda i, s: (i, 0, 0))
    else:
        data_map = lambda i: (i, 0, 0)
        pos_map = (lambda i: (0, 0, 0)) if resident else (lambda i: (i, 0, 0))

    data_spec = pl.BlockSpec((tile_s, B, E), data_map)
    if resident:
        # Constant block index -> DMA'd once; single-buffer it to save VMEM.
        try:
            pos_spec = pl.BlockSpec((s_pad, 1, E), pos_map,
                                    pipeline_mode=pl.Buffered(1))
        except Exception:  # older/newer BlockSpec signatures: fall back gracefully
            pos_spec = pl.BlockSpec((s_pad, 1, E), pos_map)
    else:
        pos_spec = pl.BlockSpec((tile_s, 1, E), pos_map)
    return data_spec, pos_spec


def positional_encoding(token_embedding: jnp.ndarray,
                        pos_embedding: jnp.ndarray,
                        dropout_p: float = 0.1,
                        training: bool = False,
                        seed: int = 0,
                        *,
                        pos_resident_bytes: int = 4 << 20) -> jnp.ndarray:
    """token_embedding: (S, B, E); pos_embedding: (maxlen, 1, E)."""
    S, B, E = token_embedding.shape
    assert pos_embedding.shape[0] >= S and pos_embedding.shape[-1] == E
    dtype = token_embedding.dtype
    itemsize = jnp.dtype(dtype).itemsize

    # Positional rows for this sequence, cast to the input dtype; kept at
    # (S, 1, E) -- the batch broadcast happens inside the kernel (no jnp.tile
    # materializing an x-sized copy in HBM).
    pos = pos_embedding[:S].astype(dtype)                       # (S, 1, E)

    slab_bytes = B * E * itemsize                               # one seq row of x
    # TODO(synk): if a single (1, B, E) row exceeds the block budget, add a second
    # grid axis over E (multiples of 128) instead of accepting an oversized block.
    tile_s = _choose_tile_s(S, slab_bytes)
    num_tiles = -(-S // tile_s)
    s_pad = num_tiles * tile_s

    # Keep the pos table fully VMEM-resident when small (gated on the TRUE pos
    # bytes): constant block index -> fetched once, no per-step DMA churn.
    resident = (s_pad * E * itemsize) <= pos_resident_bytes
    if resident and s_pad != S:
        pos = jnp.pad(pos, ((0, s_pad - S), (0, 0), (0, 0)))

    # Note: for real models E is a multiple of 128 so output stores are unmasked
    # vst; for tiny demo E the block's last dim equals the full dim (allowed).
    out_shape = jax.ShapeDtypeStruct((S, B, E), dtype)
    compiler_params = pltpu.CompilerParams(
        dimension_semantics=("parallel",),     # shard seq grid over v7x's 2 TCs
        vmem_limit_bytes=48 * 1024 * 1024,     # 2x(x)+2x(out)+pos at ~8 MiB blocks
    )
    cost = pl.CostEstimate(
        flops=S * B * E,
        transcendentals=0,
        bytes_accessed=(2 * S * B * E + S * E) * itemsize)

    if (not training) or dropout_p == 0.0:
        # nn.Dropout is the identity in eval mode.
        data_spec, pos_spec = _make_specs(tile_s, B, E, s_pad, resident,
                                          with_seed=False)
        kernel = functools.partial(pe_add_kernel, tile_s=tile_s, resident=resident)
        return pl.pallas_call(
            kernel,
            out_shape=out_shape,
            grid_spec=pltpu.PrefetchScalarGridSpec(
                num_scalar_prefetch=0,
                grid=(num_tiles,),
                in_specs=[data_spec, pos_spec],
                out_specs=data_spec),
            compiler_params=compiler_params,
            cost_estimate=cost,
        )(token_embedding, pos)

    keep_prob = 1.0 - float(dropout_p)
    if keep_prob <= 0.0:                       # p == 1.0: everything dropped
        return jnp.zeros_like(token_embedding)
    threshold31 = min(int(round(keep_prob * (1 << 31))), (1 << 31) - 1)

    data_spec, pos_spec = _make_specs(tile_s, B, E, s_pad, resident,
                                      with_seed=True)
    kernel = functools.partial(pe_add_dropout_kernel, tile_s=tile_s,
                               resident=resident, threshold31=threshold31,
                               inv_keep=1.0 / keep_prob, B=B, E=E)
    seed_arr = jnp.asarray([seed], dtype=jnp.int32)
    return pl.pallas_call(
        kernel,
        out_shape=out_shape,
        grid_spec=pltpu.PrefetchScalarGridSpec(
            num_scalar_prefetch=1,
            grid=(num_tiles,),
            in_specs=[data_spec, pos_spec],
            out_specs=data_spec),
        compiler_params=compiler_params,
        cost_estimate=cost,
    )(seed_arr, token_embedding, pos)


# ----------------------------------------------------------------------------
# Demo / self-check
# ----------------------------------------------------------------------------
if __name__ == "__main__":
    E = 32                      # emb_size
    MAXLEN = 64                 # small maxlen for the demo
    DROPOUT_P = 0.1
    B = 2

    key = jax.random.PRNGKey(0)
    pos_embedding = make_pos_embedding(E, MAXLEN)

    # --- Test 1: eval mode (dropout is identity), evenly tiled seq -----------
    S = 8
    x = jax.random.normal(key, (S, B, E), dtype=jnp.float32)
    ref = x + pos_embedding[:S]
    out = jax.block_until_ready(
        positional_encoding(x, pos_embedding, DROPOUT_P, training=False))
    assert out.shape == (S, B, E)
    assert jnp.allclose(out, ref, atol=1e-6), "eval-mode mismatch vs reference"

    # --- Test 2: eval mode, partial edge block (S % tile_s != 0), resident pos
    S2 = 13
    x2 = jax.random.normal(jax.random.PRNGKey(1), (S2, B, E), dtype=jnp.float32)
    ref2 = x2 + pos_embedding[:S2]
    out2 = jax.block_until_ready(
        positional_encoding(x2, pos_embedding, DROPOUT_P, training=False))
    assert jnp.allclose(out2, ref2, atol=1e-6), "partial-block (resident) mismatch"

    # --- Test 3: eval mode, streamed (non-resident) pos path, partial block --
    out3 = jax.block_until_ready(
        positional_encoding(x2, pos_embedding, DROPOUT_P, training=False,
                            pos_resident_bytes=0))
    assert jnp.allclose(out3, ref2, atol=1e-6), "partial-block (streamed) mismatch"

    # --- Test 4: training mode (in-kernel hash dropout) -----------------------
    out_tr = jax.block_until_ready(
        positional_encoding(x, pos_embedding, DROPOUT_P, training=True, seed=123))
    assert out_tr.shape == (S, B, E)
    keep_prob = 1.0 - DROPOUT_P
    kept = out_tr != 0.0
    assert jnp.allclose(jnp.where(kept, out_tr, 0.0),
                        jnp.where(kept, ref / keep_prob, 0.0),
                        rtol=1e-5, atol=1e-5), "training-mode kept values wrong"
    frac_dropped = 1.0 - jnp.mean(kept.astype(jnp.float32))
    assert 0.0 < float(frac_dropped) < 0.5, "dropout rate implausible"

    print("KERNEL_OK")
</pallas_src>

<mosaic_0001>
module attributes {stable_mosaic.version = 11 : i64} {
  func.func @pe_add_kernel(%arg0: i32, %arg1: memref<4x2x32xf32, #tpu.memory_space<vmem>>, %arg2: memref<8x1x32xf32, #tpu.memory_space<vmem>>, %arg3: memref<4x2x32xf32, #tpu.memory_space<vmem>>) attributes {dimension_semantics = [#tpu.dimension_semantics<parallel>], iteration_bounds = array<i64: 2>, scalar_prefetch = 0 : i64, scratch_operands = 0 : i64, tpu.core_type = #tpu.core_type<tc>, window_params = [{transform_indices = @transform_0, window_bounds = array<i64: 4, 2, 32>}, {pipeline_mode = #tpu.pipeline_mode<synchronous>, transform_indices = @transform_1, window_bounds = array<i64: 8, 1, 32>}, {transform_indices = @transform_2, window_bounds = array<i64: 4, 2, 32>}]} {
    %c0 = arith.constant 0 : index
    %c0_0 = arith.constant 0 : index
    %c0_1 = arith.constant 0 : index
    %0 = vector.load %arg1[%c0, %c0_0, %c0_1] : memref<4x2x32xf32, #tpu.memory_space<vmem>>, vector<4x2x32xf32>
    %c4_i32 = arith.constant 4 : i32
    %1 = arith.muli %arg0, %c4_i32 : i32
    %2 = tpu.assume_multiple %1, 4 : i32
    %3 = arith.index_cast %2 : i32 to index
    %c0_2 = arith.constant 0 : index
    %c0_3 = arith.constant 0 : index
    %4 = vector.load %arg2[%3, %c0_2, %c0_3] : memref<8x1x32xf32, #tpu.memory_space<vmem>>, vector<4x1x32xf32>
    %5 = vector.broadcast %4 : vector<4x1x32xf32> to vector<4x2x32xf32>
    %6 = arith.addf %0, %5 : vector<4x2x32xf32>
    %c0_4 = arith.constant 0 : index
    %c0_5 = arith.constant 0 : index
    %c0_6 = arith.constant 0 : index
    %7 = vector.load %arg3[%c0_4, %c0_5, %c0_6] : memref<4x2x32xf32, #tpu.memory_space<vmem>>, vector<4x2x32xf32>
    tpu.vector_store %arg3[%c0_4, %c0_5, %c0_6], %6 {strides = array<i32>} : memref<4x2x32xf32, #tpu.memory_space<vmem>>, vector<4x2x32xf32>,
    return
  }
  func.func @transform_0(%arg0: i32) -> (i32, i32, i32) {
    %c0_i32 = arith.constant 0 : i32
    %c0_i32_0 = arith.constant 0 : i32
    %c0_i32_1 = arith.constant 0 : i32
    return %arg0, %c0_i32, %c0_i32_0 : i32, i32, i32
  }
  func.func @transform_1(%arg0: i32) -> (i32, i32, i32) {
    %c0_i32 = arith.constant 0 : i32
    %c0_i32_0 = arith.constant 0 : i32
    %c0_i32_1 = arith.constant 0 : i32
    %c0_i32_2 = arith.constant 0 : i32
    return %c0_i32, %c0_i32_0, %c0_i32_1 : i32, i32, i32
  }
  func.func @transform_2(%arg0: i32) -> (i32, i32, i32) {
    %c0_i32 = arith.constant 0 : i32
    %c0_i32_0 = arith.constant 0 : i32
    %c0_i32_1 = arith.constant 0 : i32
    return %arg0, %c0_i32, %c0_i32_0 : i32, i32, i32
  }
}

</mosaic_0001>

<llo_original>
// kernel: tpu_custom_call.1
$region0: #{tpu_custom_call.1}
  #allocation0 [shape = 'u32[]', space=smem, size = 0x4, offset = 0x4, fixed_abs, tag = 'smem constant byte address 0x4 - core index']
  #allocation1 [shape = 'u32[144,128]{1,0:T(1,128)}', space=vmem, size = 0x12000, scoped, tag = 'internal scratch']
  %s0 = inlined_call_operand.hbm [shape: f32[8,2,32], index: 0, kind: input, shape index: {}]
  %s1 = inlined_call_operand.hbm [shape: f32[8,1,32], index: 1, kind: input, shape index: {}]
  %s2 = inlined_call_operand.hbm [shape: f32[8,2,32], index: 2, kind: output, shape index: {}]
  %s3 = sld [smem:[#allocation0]]
  $region49: #{tpu_custom_call.1} parent=0
    _
  %s5 = ssub.s32 1, %s3
  %s6 = scalar_select 0, %s5, %s3
  $region1: #{tpu_custom_call.1} parent=0
    #allocation2 [shape = 'u8[8192]{0}', space=vmem, size = 0x2000, scoped, tag = 'input window, operand 0']
    #allocation3 [shape = 's32[2]{0}', space=sflag, size = 0x8, scoped, tag = 'scoped memory for tpu_custom_call.1']
    #allocation4 [shape = 's32[2]{0}', space=sflag, size = 0x8, scoped, tag = 'scoped memory for tpu_custom_call.1']
    #allocation5 [shape = 'u8[4096]{0}', space=vmem, size = 0x1000, scoped, tag = 'input window, operand 1, single buffered']
    #allocation6 [shape = 's32[1]{0}', space=sflag, size = 0x4, scoped, tag = 'scoped memory for tpu_custom_call.1']
    #allocation7 [shape = 'u8[8192]{0}', space=vmem, size = 0x2000, scoped, tag = 'output window, operand 0']
    %7 = vsyncpa [#allocation3], 0
    %s8 = scalar_lea.sflag [#allocation3], 1
    %9 = vsyncpa %s8, 0
    %10 = vsyncpa [#allocation6], 0
    %11 = vsyncpa [#allocation4], 0
    %s12 = scalar_lea.sflag [#allocation4], 1
    %13 = vsyncpa %s12, 0
    loop: start=0, step=1, limit=4
    $region2: #{tpu_custom_call.1} parent=1 // loop_pre_header
      _
    $region3: #{tpu_custom_call.1} parent=1 // loop_header
      %s15 = sphi 0, %s19
      %p16 = scmp.ge.s32.totalorder %s15, 4
      %s25 = sphi 0, %s27
      %s28 = sphi 0, %s25
      %s29 = sphi 0, %s28
      %s45 = sphi 0, %s29
      %s49 = sphi 0, %s49
      %s51 = sphi 0, %s49
      %s52 = sphi 0, %s51
      %s66 = sphi 0, %s52
      %s72 = sphi 0, %s74
      %s75 = sphi 0, %s72
      %s76 = sphi 0, %s75
      %s92 = sphi 0, %s76
    $region4: #{tpu_custom_call.1} parent=1 // loop_header_branch
      %18 = sbr.rel (%p16) target = $region8
    $region5: #{tpu_custom_call.1} parent=1 // loop_body
      %s20 = ssub.s32 %s15, 1
      %s21 = ssub.s32 %s15, 2
      %s22 = sadd.s32 %s15, 1
      %s23 = ssub.s32 %s15, %s22
      %p24 = scmp.eq.s32.totalorder %s23, 0
      %s26 = sadd.s32 %s25, 1
      %s27 = scalar_select %p24, %s25, %s26
      %p30 = pneg %p24
      %p31 = scmp.eq.s32.totalorder %s15, 1
      %p32 = por %p30, %p31
      %p33 = scmp.ne.s32.totalorder %s25, %s28
      %p34 = scmp.eq.s32.totalorder %s15, 0
      %p35 = por %p33, %p34
      %p36 = scmp.ne.s32.totalorder %s25, %s28
      %p37 = scmp.eq.s32.totalorder %s20, 1
      %p38 = por %p36, %p37
      %p39 = scmp.ne.s32.totalorder %s28, %s29
      %p40 = scmp.eq.s32.totalorder %s20, 0
      %p41 = por %p39, %p40
      %p42 = scmp.ne.s32.totalorder %s28, %s29
      %p43 = scmp.eq.s32.totalorder %s21, 1
      %p44 = por %p42, %p43
      %p46 = scmp.ne.s32.totalorder %s29, %s45
      %p47 = scmp.eq.s32.totalorder %s21, 0
      %p48 = por %p46, %p47
      %s50 = sadd.s32 %s49, 1
      %p53 = scmp.eq.s32.totalorder %s15, 1
      %p54 = scmp.ne.s32.totalorder %s49, %s51
      %p55 = scmp.eq.s32.totalorder %s15, 0
      %p56 = por %p54, %p55
      %p57 = scmp.ne.s32.totalorder %s49, %s51
      %p58 = scmp.eq.s32.totalorder %s20, 1
      %p59 = por %p57, %p58
      %p60 = scmp.ne.s32.totalorder %s51, %s52
      %p61 = scmp.eq.s32.totalorder %s20, 0
      %p62 = por %p60, %p61
      %p63 = scmp.ne.s32.totalorder %s51, %s52
      %p64 = scmp.eq.s32.totalorder %s21, 1
      %p65 = por %p63, %p64
      %p67 = scmp.ne.s32.totalorder %s52, %s66
      %p68 = scmp.eq.s32.totalorder %s21, 0
      %p69 = por %p67, %p68
      %s70 = ssub.s32 %s15, %s22
      %p71 = scmp.eq.s32.totalorder %s70, 0
      %s73 = sadd.s32 %s72, 1
      %s74 = scalar_select %p71, %s72, %s73
      %p77 = pneg %p71
      %p78 = scmp.eq.s32.totalorder %s15, 1
      %p79 = por %p77, %p78
      %p80 = scmp.ne.s32.totalorder %s72, %s75
      %p81 = scmp.eq.s32.totalorder %s15, 0
      %p82 = por %p80, %p81
      %p83 = scmp.ne.s32.totalorder %s72, %s75
      %p84 = scmp.eq.s32.totalorder %s20, 1
      %p85 = por %p83, %p84
      %p86 = scmp.ne.s32.totalorder %s75, %s76
      %p87 = scmp.eq.s32.totalorder %s20, 0
      %p88 = por %p86, %p87
      %p89 = scmp.ne.s32.totalorder %s75, %s76
      %p90 = scmp.eq.s32.totalorder %s21, 1
      %p91 = por %p89, %p90
      %p93 = scmp.ne.s32.totalorder %s76, %s92
      %p94 = scmp.eq.s32.totalorder %s21, 0
      %p95 = por %p93, %p94
      %p96 = scmp.le.s32.totalorder 1, %s15
      %p97 = scmp.lt.s32.totalorder %s15, 3
      %p98 = pnand %p96, %p97
      %p99 = pneg %p98
      // Predicated region
      $region9: #{tpu_custom_call.1} parent=5 // pred_check
        _
      $region10: #{tpu_custom_call.1} parent=5 // pred_check_branch
        %101 = sbr.rel (%p98) target = $region12
      $region11: #{tpu_custom_call.1} parent=5 // pred_region
        %s102 = ssub.s32 %s15, 1
        // Predicated region
        $region13: #{tpu_custom_call.1} parent=11 // pred_check
          %p103 = pneg %p62
        $region14: #{tpu_custom_call.1} parent=11 // pred_check_branch
          %105 = sbr.rel (%p103) target = $region16
        $region15: #{tpu_custom_call.1} parent=11 // pred_region
          %s107 = ssub.s32 128, 128
          %108 = vsyncadd [#allocation6], %s107
          %s109 = sshll.u32 [#allocation5], 4
          %s110 = int_to_ptr.vmem [resolvable:$true] %s109
          %115 = dma.hbm_to_vmem [thread:$0]  %s1, 128, %s110, [#allocation6], 16, 16, 1
        $region16: #{tpu_custom_call.1} parent=11 // pred_fallthru
          _
      $region12: #{tpu_custom_call.1} parent=5 // pred_fallthru
        _
      %p116 = scmp.lt.s32.totalorder %s15, 2
      // Predicated region
      $region17: #{tpu_custom_call.1} parent=5 // pred_check
        %p117 = pneg %p116
      $region18: #{tpu_custom_call.1} parent=5 // pred_check_branch
        %119 = sbr.rel (%p117) target = $region20
      $region19: #{tpu_custom_call.1} parent=5 // pred_region
        // Predicated region
        $region21: #{tpu_custom_call.1} parent=19 // pred_check
          %p120 = pneg %p35
        $region22: #{tpu_custom_call.1} parent=19 // pred_check_branch
          %122 = sbr.rel (%p120) target = $region24
        $region23: #{tpu_custom_call.1} parent=19 // pred_region
          %s123 = sand.u32 %s25, 1
          %s124 = scalar_lea.sflag [#allocation3], %s123
          %s125 = sand.u32 %s25, 1
          %s126 = smul.addr %s125, 8
          %s127 = scalar_lea.vmem [#allocation2], %s126
          %s128 = smul.u32 4, %s15
          %s130 = ssub.s32 128, 128
          %131 = vsyncadd %s124, %s130
          %s132 = smul.addr %s128, 32
          %s133 = scalar_lea.hbm %s0, %s132
          %s134 = sshll.u32 %s127, 4
          %s135 = int_to_ptr.vmem [resolvable:$true] %s134
          %140 = dma.hbm_to_vmem [thread:$0]  %s133, 128, %s135, %s124, 32, 32, 2
        $region24: #{tpu_custom_call.1} parent=19 // pred_fallthru
          _
      $region20: #{tpu_custom_call.1} parent=5 // pred_fallthru
        _
      %p141 = scmp.le.s32.totalorder 1, %s15
      %p142 = scmp.lt.s32.totalorder %s15, 3
      %p143 = pnand %p141, %p142
      %p144 = pneg %p143
      // Predicated region
      $region25: #{tpu_custom_call.1} parent=5 // pred_check
        _
      $region26: #{tpu_custom_call.1} parent=5 // pred_check_branch
        %146 = sbr.rel (%p143) target = $region28
      $region27: #{tpu_custom_call.1} parent=5 // pred_region
        %s147 = ssub.s32 %s15, 1
        %s148 = sand.u32 %s28, 1
        %s149 = scalar_lea.sflag [#allocation3], %s148
        %s150 = sand.u32 %s28, 1
        %s151 = smul.addr %s150, 8
        %s152 = scalar_lea.vmem [#allocation2], %s151
        // Predicated region
        $region29: #{tpu_custom_call.1} parent=27 // pred_check
          %p153 = pneg %p41
        $region30: #{tpu_custom_call.1} parent=27 // pred_check_branch
          %155 = sbr.rel (%p153) target = $region32
        $region31: #{tpu_custom_call.1} parent=27 // pred_region
          %156 = dma.done %s149, 128
        $region32: #{tpu_custom_call.1} parent=27 // pred_fallthru
          _
        // Predicated region
        $region33: #{tpu_custom_call.1} parent=27 // pred_check
          %p157 = pneg %p62
        $region34: #{tpu_custom_call.1} parent=27 // pred_check_branch
          %159 = sbr.rel (%p157) target = $region36
        $region35: #{tpu_custom_call.1} parent=27 // pred_region
          %160 = dma.done [#allocation6], 128
        $region36: #{tpu_custom_call.1} parent=27 // pred_fallthru
          _
        %s161 = sand.u32 %s28, 1
        %s162 = scalar_lea.sflag [#allocation3], %s161
        %s163 = sand.u32 %s28, 1
        %s164 = smul.addr %s163, 8
        %s165 = scalar_lea.vmem [#allocation2], %s164
        %p166 = pneg %p41
        %p167 = pneg %p38
        %p168 = pneg %p62
        %p169 = pneg %p59
        %p170 = pneg %p88
        %p171 = pneg %p85
        %s172 = sand.u32 %s75, 1
        %s173 = scalar_lea.sflag [#allocation4], %s172
        %s174 = sand.u32 %s75, 1
        %s175 = smul.addr %s174, 8
        %s176 = scalar_lea.vmem [#allocation7], %s175
        %s177 = smul.u32 4, %s20
        %s178 = smul.u32 4, %s20
        %v179 = vld [vmem:[%s152] sm:$0x3]
        %v180 = vld [vmem:[%s152 + $0x2] sm:$0x3]
        %v181 = vld [vmem:[%s152 + $0x4] sm:$0x3]
        %v182 = vld [vmem:[%s152 + $0x6] sm:$0x3]
        %s183 = smul.u32 %s20, 4
        %s184 = scalar_lea.vmem [#allocation5], %s183
        %v185 = vld [vmem:[%s184] sm:$0x1]
        %v186 = vld [vmem:[%s184 + $0x1] sm:$0x1]
        %v187 = vld [vmem:[%s184 + $0x2] sm:$0x1]
        %v188 = vld [vmem:[%s184 + $0x3] sm:$0x1]
        %v193 = vlaneseq
        %v194 = vshrl.u32 %v193, 7
        %v195 = vsub.s32 0, %v194
        %v196 = vrot.slane %v185, %v195
        %v197 = vlaneseq
        %v198 = vshrl.u32 %v197, 7
        %v199 = vsub.s32 0, %v198
        %v200 = vrot.slane %v186, %v199
        %v201 = vlaneseq
        %v202 = vshrl.u32 %v201, 7
        %v203 = vsub.s32 0, %v202
        %v204 = vrot.slane %v187, %v203
        %v205 = vlaneseq
        %v206 = vshrl.u32 %v205, 7
        %v207 = vsub.s32 0, %v206
        %v208 = vrot.slane %v188, %v207
        %v213 = vadd.f32 %v179, %v196
        %v214 = vadd.f32 %v180, %v200
        %v215 = vadd.f32 %v181, %v204
        %v216 = vadd.f32 %v182, %v208
        %vm217 = vcmask 254976
        %218 = vst.msk [vmem:[%s176] sm:$0x3] %vm217, %v213
        %219 = vst.msk [vmem:[%s176 + $0x2] sm:$0x3] %vm217, %v214
        %220 = vst.msk [vmem:[%s176 + $0x4] sm:$0x3] %vm217, %v215
        %221 = vst.msk [vmem:[%s176 + $0x6] sm:$0x3] %vm217, %v216
        %s222 = sand.u32 %s75, 1
        %s223 = scalar_lea.sflag [#allocation4], %s222
        %s224 = sand.u32 %s75, 1
        %s225 = smul.addr %s224, 8
        %s226 = scalar_lea.vmem [#allocation7], %s225
        // Predicated region
        $region37: #{tpu_custom_call.1} parent=27 // pred_check
          %p227 = pneg %p85
        $region38: #{tpu_custom_call.1} parent=27 // pred_check_branch
          %229 = sbr.rel (%p227) target = $region40
        $region39: #{tpu_custom_call.1} parent=27 // pred_region
          %s230 = smul.u32 4, %s20
          %s232 = ssub.s32 128, 128
          %233 = vsyncadd %s223, %s232
          %s234 = smul.addr %s230, 32
          %s235 = scalar_lea.hbm %s2, %s234
          %s236 = sshll.u32 %s226, 4
          %s237 = int_to_ptr.vmem [resolvable:$true] %s236
          %242 = dma.vmem_to_hbm [thread:$0]  %s237, 128, %s235, %s223, 32, 32, 2
        $region40: #{tpu_custom_call.1} parent=27 // pred_fallthru
          _
      $region28: #{tpu_custom_call.1} parent=5 // pred_fallthru
        _
      %p243 = scmp.le.s32.totalorder 2, %s15
      // Predicated region
      $region41: #{tpu_custom_call.1} parent=5 // pred_check
        %p244 = pneg %p243
      $region42: #{tpu_custom_call.1} parent=5 // pred_check_branch
        %246 = sbr.rel (%p244) target = $region44
      $region43: #{tpu_custom_call.1} parent=5 // pred_region
        %s247 = ssub.s32 %s15, 2
        // Predicated region
        $region45: #{tpu_custom_call.1} parent=43 // pred_check
          %p248 = pneg %p91
        $region46: #{tpu_custom_call.1} parent=43 // pred_check_branch
          %250 = sbr.rel (%p248) target = $region48
        $region47: #{tpu_custom_call.1} parent=43 // pred_region
          %s251 = sand.u32 %s76, 1
          %s252 = scalar_lea.sflag [#allocation4], %s251
          %s253 = sand.u32 %s76, 1
          %s254 = smul.addr %s253, 8
          %s255 = scalar_lea.vmem [#allocation7], %s254
          %256 = dma.done %s252, 128
        $region48: #{tpu_custom_call.1} parent=43 // pred_fallthru
          _
      $region44: #{tpu_custom_call.1} parent=5 // pred_fallthru
        _
    $region6: #{tpu_custom_call.1} parent=1 // loop_footer
      %s19 = sadd.s32 1, %s15
    $region7: #{tpu_custom_call.1} parent=1 // loop_footer_branch
      %14 = sbr.rel target = $region3
    $region8: #{tpu_custom_call.1} parent=1 // loop_exit
      _
    %257 = vsyncpa [#allocation3], 1
    %s258 = scalar_lea.sflag [#allocation3], 1
    %259 = vsyncpa %s258, 1
    %260 = vsyncpa [#allocation6], 1
    %261 = vsyncpa [#allocation4], 1
    %s262 = scalar_lea.sflag [#allocation4], 1
    %263 = vsyncpa %s262, 1

</llo_original>
